<compile_context>
chip_gen: v5e
topology: v5e:2x2
jax: 0.10.0
libtpu: 0.0.40
codegen_flags: <defaults>
</compile_context>

<pallas_src>
from functools import partial

import jax
import jax.numpy as jnp
from jax.experimental import pallas as pl
from jax.experimental.pallas import tpu as pltpu

_LANE = 128
_SUBLANE = 8
_VMEM_BUDGET = 24 * 1024 * 1024   # per-step double-buffered working set (fits v7x)
_ACC_MAX_ELEMS = 32 * 1024        # acc_r + acc_i <= ~half the 64x1024-elem vreg file


# ----------------------------- Pallas kernel ------------------------------ #
def _spectral_mul_kernel(x_ref, w_ref, o_ref, *, bt, ci, co):
    # x_ref: (2, bt*ci, TM)  [real; imag] folded rows, row = b*ci + i
    # w_ref: (2, ci*co, TM)  [real; imag] folded rows, row = i*co + o
    # o_ref: (2, bt*co, TM)  [real; imag] folded rows, row = b*co + o   (f32)
    tm = o_ref.shape[-1]
    f32 = jnp.float32
    # Small static trip counts -> fully unrolled straight-line VPU code.
    # (For very large Ci one would switch the inner loop to lax.fori_loop.)
    for b in range(bt):
        acc_r = jnp.zeros((co, tm), f32)
        acc_i = jnp.zeros((co, tm), f32)
        for i in range(ci):
            r = b * ci + i
            xr = x_ref[0, r:r + 1, :].astype(f32)          # (1, TM)
            xi = x_ref[1, r:r + 1, :].astype(f32)
            wr = w_ref[0, i * co:(i + 1) * co, :].astype(f32)   # (Co, TM)
            wi = w_ref[1, i * co:(i + 1) * co, :].astype(f32)
            acc_r = acc_r + xr * wr - xi * wi
            acc_i = acc_i + xr * wi + xi * wr
        o_ref[0, b * co:(b + 1) * co, :] = acc_r
        o_ref[1, b * co:(b + 1) * co, :] = acc_i


# ------------------------------ Tiling logic ------------------------------- #
def _footprint_bytes(bt, ci, co, block_m, in_itemsize):
    """Double-buffered VMEM working set of one grid step."""
    in_rows = 2 * (bt * ci + ci * co)     # x block + w block (real + imag)
    out_rows = 2 * (bt * co)              # output block (f32)
    return 2 * block_m * (in_rows * in_itemsize + out_rows * 4)


def _choose_tiling(B, Ci, Co, Mp, in_itemsize):
    """Pick (block_m, batch_tile) from the real per-step footprint."""
    # Mode-block candidates: multiples of 128 dividing Mp, largest first,
    # with the live accumulator (2*Co*block_m f32 elements) bounded.
    m_cands = [m for m in range(Mp, 0, -_LANE)
               if Mp % m == 0 and 2 * Co * m <= _ACC_MAX_ELEMS] or [_LANE]
    # Keep >= 2 mode blocks whenever the padded mode axis is splittable
    # (v7x megacore + DMA/compute overlap).
    if Mp >= 2 * _LANE:
        capped = [m for m in m_cands if m <= Mp // 2]
        if capped:
            m_cands = capped
    # Batch-tile candidates: divisors of B; sub-batch blocks must keep the
    # row axis aligned to the (packed) sublane tile (8 rows f32, 16 rows bf16).
    in_align = _SUBLANE * max(1, 4 // in_itemsize)
    b_cands = [b for b in range(B, 0, -1)
               if B % b == 0 and (b == B or (b * Ci % in_align == 0
                                             and b * Co % _SUBLANE == 0))]
    for block_m in m_cands:          # prefer wide (lane-dense) blocks ...
        for bt in b_cands:           # ... then the largest batch tile that fits
            if _footprint_bytes(bt, Ci, Co, block_m, in_itemsize) <= _VMEM_BUDGET:
                return block_m, bt
    return _LANE, b_cands[-1]


# --------------------------- pallas_call wrapper --------------------------- #
def spectral_compl_mul(x_packed, w_packed, B, Ci, Co):
    """Complex per-mode channel mixing; mode axis last (lane-dense), rows folded.

    x_packed : (2, B*Ci,  Mp)  storage dtype (bf16 or f32)
    w_packed : (2, Ci*Co, Mp)  storage dtype
    returns    (2, B*Co,  Mp)  float32
    """
    Mp = x_packed.shape[-1]
    block_m, bt = _choose_tiling(B, Ci, Co, Mp, x_packed.dtype.itemsize)
    grid = (Mp // block_m, B // bt)    # mode axis outermost, batch innermost

    kernel = partial(_spectral_mul_kernel, bt=bt, ci=Ci, co=Co)
    return pl.pallas_call(
        kernel,
        out_shape=jax.ShapeDtypeStruct((2, B * Co, Mp), jnp.float32),
        grid=grid,
        in_specs=[
            pl.BlockSpec((2, bt * Ci, block_m), lambda m, b: (0, b, m)),
            # Weight index_map is independent of b: the block is DMA'd once per
            # mode block and reused across all batch steps.
            pl.BlockSpec((2, Ci * Co, block_m), lambda m, b: (0, 0, m)),
        ],
        out_specs=pl.BlockSpec((2, bt * Co, block_m), lambda m, b: (0, b, m)),
        compiler_params=pltpu.CompilerParams(
            dimension_semantics=("parallel", "parallel"),
            vmem_limit_bytes=64 * 1024 * 1024,
        ),
    )(x_packed, w_packed)


# ------------------------------ Forward pass ------------------------------- #
@partial(jax.jit, static_argnames=("modes1", "modes2"))
def spectral_conv2d_forward(x, w_packed, modes1, modes2):
    B, Ci, H, W = x.shape
    m1, m2 = modes1, modes2
    Co = w_packed.shape[1] // Ci
    M = 2 * m1 * m2
    Mp = w_packed.shape[-1]
    Wf = W // 2 + 1

    # TODO(synk): rfft2/irfft2 have no Pallas equivalent; kept as XLA FFT ops.
    x_ft = jnp.fft.rfft2(x)                                   # (B, Ci, H, Wf)

    # Gather the retained low/high frequency corner blocks; mode axes are the
    # trailing axes of x_ft, so the flattened mode axis stays last (lane-dense).
    top = x_ft[:, :, :m1, :m2]                                # (B, Ci, m1, m2)
    bot = x_ft[:, :, H - m1:, :m2]                            # (B, Ci, m1, m2)
    xs = jnp.concatenate([top, bot], axis=2).reshape(B, Ci, M)
    x_packed = jnp.stack([jnp.real(xs), jnp.imag(xs)], axis=0)  # (2, B, Ci, M)
    x_packed = x_packed.reshape(2, B * Ci, M)                 # folded, dense rows
    x_packed = jnp.pad(x_packed, ((0, 0), (0, 0), (0, Mp - M)))
    x_packed = x_packed.astype(w_packed.dtype)

    out = spectral_compl_mul(x_packed, w_packed, B, Ci, Co)   # (2, B*Co, Mp) f32
    out = out[..., :M].reshape(2, B, Co, 2 * m1, m2)
    out_c = (out[0] + 1j * out[1]).astype(jnp.complex64)      # (B, Co, 2m1, m2)

    out_ft = jnp.zeros((B, Co, H, Wf), jnp.complex64)
    out_ft = out_ft.at[:, :, :m1, :m2].set(out_c[:, :, :m1])
    out_ft = out_ft.at[:, :, H - m1:, :m2].set(out_c[:, :, m1:])
    return jnp.fft.irfft2(out_ft, s=(H, W))                   # (B, Co, H, W)


# --------------------------- Module equivalent ----------------------------- #
class SpectralConv2dPallas:
    def __init__(self, in_channels, out_channels, modes1, modes2, key,
                 param_dtype=jnp.bfloat16):
        self.in_channels = in_channels
        self.out_channels = out_channels
        self.modes1 = modes1
        self.modes2 = modes2
        scale = 1.0 / (in_channels * out_channels)
        shape = (in_channels, out_channels, modes1, modes2)
        k1, k2, k3, k4 = jax.random.split(key, 4)
        # torch.rand(..., dtype=cfloat): real and imag parts ~ U[0,1)
        self.w1r = scale * jax.random.uniform(k1, shape, jnp.float32)
        self.w1i = scale * jax.random.uniform(k2, shape, jnp.float32)
        self.w2r = scale * jax.random.uniform(k3, shape, jnp.float32)
        self.w2i = scale * jax.random.uniform(k4, shape, jnp.float32)

        # Kernel-ready layout, built ONCE: both corner blocks flattened onto one
        # trailing mode axis (padded to a lane multiple), channel axes folded
        # into a dense row axis (row = i*Co + o), storage in param_dtype.
        M = 2 * modes1 * modes2
        Mp = -(-M // _LANE) * _LANE
        wr = jnp.concatenate([self.w1r, self.w2r], axis=2)    # (Ci,Co,2m1,m2)
        wi = jnp.concatenate([self.w1i, self.w2i], axis=2)
        wr = wr.reshape(in_channels * out_channels, M)        # row = i*Co + o
        wi = wi.reshape(in_channels * out_channels, M)
        w_packed = jnp.stack([wr, wi], axis=0)                # (2, Ci*Co, M)
        w_packed = jnp.pad(w_packed, ((0, 0), (0, 0), (0, Mp - M)))
        self.w_packed = w_packed.astype(param_dtype)

    def __call__(self, x):
        # x: (B, C_in, H, W) float32  (NCHW, same as PyTorch)
        return spectral_conv2d_forward(
            x, self.w_packed, self.modes1, self.modes2)


# Pure-JAX reference (mirrors the PyTorch forward exactly) for verification.
def reference_forward(mod, x):
    B, Ci, H, W = x.shape
    m1, m2 = mod.modes1, mod.modes2
    Co = mod.out_channels
    Wf = W // 2 + 1
    w1 = (mod.w1r + 1j * mod.w1i).astype(jnp.complex64)
    w2 = (mod.w2r + 1j * mod.w2i).astype(jnp.complex64)
    x_ft = jnp.fft.rfft2(x)
    out_ft = jnp.zeros((B, Co, H, Wf), jnp.complex64)
    out_ft = out_ft.at[:, :, :m1, :m2].set(
        jnp.einsum('bixy,ioxy->boxy', x_ft[:, :, :m1, :m2], w1))
    out_ft = out_ft.at[:, :, H - m1:, :m2].set(
        jnp.einsum('bixy,ioxy->boxy', x_ft[:, :, -m1:, :m2], w2))
    return jnp.fft.irfft2(out_ft, s=(H, W))


if __name__ == "__main__":
    key = jax.random.PRNGKey(0)
    k_param, k_x = jax.random.split(key)

    B, Ci, Co, H, W = 2, 4, 4, 16, 16
    modes1, modes2 = 4, 4
    x = jax.random.normal(k_x, (B, Ci, H, W), jnp.float32)

    # f32-storage path: tight check against the PyTorch-equivalent reference.
    mod_f32 = SpectralConv2dPallas(Ci, Co, modes1, modes2, k_param,
                                   param_dtype=jnp.float32)
    y32 = jax.block_until_ready(mod_f32(x))
    y_ref = jax.block_until_ready(reference_forward(mod_f32, x))
    assert y32.shape == (B, Co, H, W)
    assert jnp.allclose(y32, y_ref, rtol=1e-4, atol=1e-5), "f32 mismatch vs ref"

    # bf16-storage path (default; halves HBM traffic on the mem-bound regime).
    # Accumulation stays f32, so only input/weight mantissa is quantized.
    mod_bf16 = SpectralConv2dPallas(Ci, Co, modes1, modes2, k_param)
    y16 = jax.block_until_ready(mod_bf16(x))
    assert y16.shape == (B, Co, H, W)
    assert jnp.allclose(y16, y_ref, rtol=3e-2, atol=1e-2), "bf16 mismatch vs ref"

    print("KERNEL_OK")
</pallas_src>

<mosaic_0001>
module attributes {stable_mosaic.version = 11 : i64} {
  func.func @_spectral_mul_kernel(%arg0: i32, %arg1: i32, %arg2: memref<2x8x128xf32, #tpu.memory_space<vmem>>, %arg3: memref<2x16x128xf32, #tpu.memory_space<vmem>>, %arg4: memref<2x8x128xf32, #tpu.memory_space<vmem>>) attributes {dimension_semantics = [#tpu.dimension_semantics<parallel>, #tpu.dimension_semantics<parallel>], iteration_bounds = array<i64: 1, 1>, scalar_prefetch = 0 : i64, scratch_operands = 0 : i64, tpu.core_type = #tpu.core_type<tc>, window_params = [{transform_indices = @transform_0, window_bounds = array<i64: 2, 8, 128>}, {transform_indices = @transform_1, window_bounds = array<i64: 2, 16, 128>}, {transform_indices = @transform_2, window_bounds = array<i64: 2, 8, 128>}]} {
    %cst = arith.constant 0.000000e+00 : f32
    %0 = vector.broadcast %cst : f32 to vector<4x128xf32>
    %cst_0 = arith.constant 0.000000e+00 : f32
    %1 = vector.broadcast %cst_0 : f32 to vector<4x128xf32>
    %c0 = arith.constant 0 : index
    %c0_1 = arith.constant 0 : index
    %c0_2 = arith.constant 0 : index
    %2 = vector.load %arg2[%c0, %c0_1, %c0_2] : memref<2x8x128xf32, #tpu.memory_space<vmem>>, vector<1x1x128xf32>
    %3 = vector.shape_cast %2 : vector<1x1x128xf32> to vector<1x128xf32>
    %c1 = arith.constant 1 : index
    %c0_3 = arith.constant 0 : index
    %c0_4 = arith.constant 0 : index
    %4 = vector.load %arg2[%c1, %c0_3, %c0_4] : memref<2x8x128xf32, #tpu.memory_space<vmem>>, vector<1x1x128xf32>
    %5 = vector.shape_cast %4 : vector<1x1x128xf32> to vector<1x128xf32>
    %c0_5 = arith.constant 0 : index
    %c0_6 = arith.constant 0 : index
    %c0_7 = arith.constant 0 : index
    %6 = vector.load %arg3[%c0_5, %c0_6, %c0_7] : memref<2x16x128xf32, #tpu.memory_space<vmem>>, vector<1x4x128xf32>
    %7 = vector.shape_cast %6 : vector<1x4x128xf32> to vector<4x128xf32>
    %c1_8 = arith.constant 1 : index
    %c0_9 = arith.constant 0 : index
    %c0_10 = arith.constant 0 : index
    %8 = vector.load %arg3[%c1_8, %c0_9, %c0_10] : memref<2x16x128xf32, #tpu.memory_space<vmem>>, vector<1x4x128xf32>
    %9 = vector.shape_cast %8 : vector<1x4x128xf32> to vector<4x128xf32>
    %10 = vector.broadcast %3 : vector<1x128xf32> to vector<4x128xf32>
    %11 = arith.mulf %10, %7 : vector<4x128xf32>
    %12 = arith.addf %0, %11 : vector<4x128xf32>
    %13 = vector.broadcast %5 : vector<1x128xf32> to vector<4x128xf32>
    %14 = arith.mulf %13, %9 : vector<4x128xf32>
    %15 = arith.subf %12, %14 : vector<4x128xf32>
    %16 = vector.broadcast %3 : vector<1x128xf32> to vector<4x128xf32>
    %17 = arith.mulf %16, %9 : vector<4x128xf32>
    %18 = arith.addf %1, %17 : vector<4x128xf32>
    %19 = vector.broadcast %5 : vector<1x128xf32> to vector<4x128xf32>
    %20 = arith.mulf %19, %7 : vector<4x128xf32>
    %21 = arith.addf %18, %20 : vector<4x128xf32>
    %c0_11 = arith.constant 0 : index
    %c1_12 = arith.constant 1 : index
    %c0_13 = arith.constant 0 : index
    %22 = vector.load %arg2[%c0_11, %c1_12, %c0_13] : memref<2x8x128xf32, #tpu.memory_space<vmem>>, vector<1x1x128xf32>
    %23 = vector.shape_cast %22 : vector<1x1x128xf32> to vector<1x128xf32>
    %c1_14 = arith.constant 1 : index
    %c1_15 = arith.constant 1 : index
    %c0_16 = arith.constant 0 : index
    %24 = vector.load %arg2[%c1_14, %c1_15, %c0_16] : memref<2x8x128xf32, #tpu.memory_space<vmem>>, vector<1x1x128xf32>
    %25 = vector.shape_cast %24 : vector<1x1x128xf32> to vector<1x128xf32>
    %c0_17 = arith.constant 0 : index
    %c4 = arith.constant 4 : index
    %c0_18 = arith.constant 0 : index
    %26 = vector.load %arg3[%c0_17, %c4, %c0_18] : memref<2x16x128xf32, #tpu.memory_space<vmem>>, vector<1x4x128xf32>
    %27 = vector.shape_cast %26 : vector<1x4x128xf32> to vector<4x128xf32>
    %c1_19 = arith.constant 1 : index
    %c4_20 = arith.constant 4 : index
    %c0_21 = arith.constant 0 : index
    %28 = vector.load %arg3[%c1_19, %c4_20, %c0_21] : memref<2x16x128xf32, #tpu.memory_space<vmem>>, vector<1x4x128xf32>
    %29 = vector.shape_cast %28 : vector<1x4x128xf32> to vector<4x128xf32>
    %30 = vector.broadcast %23 : vector<1x128xf32> to vector<4x128xf32>
    %31 = arith.mulf %30, %27 : vector<4x128xf32>
    %32 = arith.addf %15, %31 : vector<4x128xf32>
    %33 = vector.broadcast %25 : vector<1x128xf32> to vector<4x128xf32>
    %34 = arith.mulf %33, %29 : vector<4x128xf32>
    %35 = arith.subf %32, %34 : vector<4x128xf32>
    %36 = vector.broadcast %23 : vector<1x128xf32> to vector<4x128xf32>
    %37 = arith.mulf %36, %29 : vector<4x128xf32>
    %38 = arith.addf %21, %37 : vector<4x128xf32>
    %39 = vector.broadcast %25 : vector<1x128xf32> to vector<4x128xf32>
    %40 = arith.mulf %39, %27 : vector<4x128xf32>
    %41 = arith.addf %38, %40 : vector<4x128xf32>
    %c0_22 = arith.constant 0 : index
    %c2 = arith.constant 2 : index
    %c0_23 = arith.constant 0 : index
    %42 = vector.load %arg2[%c0_22, %c2, %c0_23] : memref<2x8x128xf32, #tpu.memory_space<vmem>>, vector<1x1x128xf32>
    %43 = vector.shape_cast %42 : vector<1x1x128xf32> to vector<1x128xf32>
    %c1_24 = arith.constant 1 : index
    %c2_25 = arith.constant 2 : index
    %c0_26 = arith.constant 0 : index
    %44 = vector.load %arg2[%c1_24, %c2_25, %c0_26] : memref<2x8x128xf32, #tpu.memory_space<vmem>>, vector<1x1x128xf32>
    %45 = vector.shape_cast %44 : vector<1x1x128xf32> to vector<1x128xf32>
    %c0_27 = arith.constant 0 : index
    %c8 = arith.constant 8 : index
    %c0_28 = arith.constant 0 : index
    %46 = vector.load %arg3[%c0_27, %c8, %c0_28] : memref<2x16x128xf32, #tpu.memory_space<vmem>>, vector<1x4x128xf32>
    %47 = vector.shape_cast %46 : vector<1x4x128xf32> to vector<4x128xf32>
    %c1_29 = arith.constant 1 : index
    %c8_30 = arith.constant 8 : index
    %c0_31 = arith.constant 0 : index
    %48 = vector.load %arg3[%c1_29, %c8_30, %c0_31] : memref<2x16x128xf32, #tpu.memory_space<vmem>>, vector<1x4x128xf32>
    %49 = vector.shape_cast %48 : vector<1x4x128xf32> to vector<4x128xf32>
    %50 = vector.broadcast %43 : vector<1x128xf32> to vector<4x128xf32>
    %51 = arith.mulf %50, %47 : vector<4x128xf32>
    %52 = arith.addf %35, %51 : vector<4x128xf32>
    %53 = vector.broadcast %45 : vector<1x128xf32> to vector<4x128xf32>
    %54 = arith.mulf %53, %49 : vector<4x128xf32>
    %55 = arith.subf %52, %54 : vector<4x128xf32>
    %56 = vector.broadcast %43 : vector<1x128xf32> to vector<4x128xf32>
    %57 = arith.mulf %56, %49 : vector<4x128xf32>
    %58 = arith.addf %41, %57 : vector<4x128xf32>
    %59 = vector.broadcast %45 : vector<1x128xf32> to vector<4x128xf32>
    %60 = arith.mulf %59, %47 : vector<4x128xf32>
    %61 = arith.addf %58, %60 : vector<4x128xf32>
    %c0_32 = arith.constant 0 : index
    %c3 = arith.constant 3 : index
    %c0_33 = arith.constant 0 : index
    %62 = vector.load %arg2[%c0_32, %c3, %c0_33] : memref<2x8x128xf32, #tpu.memory_space<vmem>>, vector<1x1x128xf32>
    %63 = vector.shape_cast %62 : vector<1x1x128xf32> to vector<1x128xf32>
    %c1_34 = arith.constant 1 : index
    %c3_35 = arith.constant 3 : index
    %c0_36 = arith.constant 0 : index
    %64 = vector.load %arg2[%c1_34, %c3_35, %c0_36] : memref<2x8x128xf32, #tpu.memory_space<vmem>>, vector<1x1x128xf32>
    %65 = vector.shape_cast %64 : vector<1x1x128xf32> to vector<1x128xf32>
    %c0_37 = arith.constant 0 : index
    %c12 = arith.constant 12 : index
    %c0_38 = arith.constant 0 : index
    %66 = vector.load %arg3[%c0_37, %c12, %c0_38] : memref<2x16x128xf32, #tpu.memory_space<vmem>>, vector<1x4x128xf32>
    %67 = vector.shape_cast %66 : vector<1x4x128xf32> to vector<4x128xf32>
    %c1_39 = arith.constant 1 : index
    %c12_40 = arith.constant 12 : index
    %c0_41 = arith.constant 0 : index
    %68 = vector.load %arg3[%c1_39, %c12_40, %c0_41] : memref<2x16x128xf32, #tpu.memory_space<vmem>>, vector<1x4x128xf32>
    %69 = vector.shape_cast %68 : vector<1x4x128xf32> to vector<4x128xf32>
    %70 = vector.broadcast %63 : vector<1x128xf32> to vector<4x128xf32>
    %71 = arith.mulf %70, %67 : vector<4x128xf32>
    %72 = arith.addf %55, %71 : vector<4x128xf32>
    %73 = vector.broadcast %65 : vector<1x128xf32> to vector<4x128xf32>
    %74 = arith.mulf %73, %69 : vector<4x128xf32>
    %75 = arith.subf %72, %74 : vector<4x128xf32>
    %76 = vector.broadcast %63 : vector<1x128xf32> to vector<4x128xf32>
    %77 = arith.mulf %76, %69 : vector<4x128xf32>
    %78 = arith.addf %61, %77 : vector<4x128xf32>
    %79 = vector.broadcast %65 : vector<1x128xf32> to vector<4x128xf32>
    %80 = arith.mulf %79, %67 : vector<4x128xf32>
    %81 = arith.addf %78, %80 : vector<4x128xf32>
    %c0_42 = arith.constant 0 : index
    %c0_43 = arith.constant 0 : index
    %c0_44 = arith.constant 0 : index
    %82 = vector.load %arg4[%c0_42, %c0_43, %c0_44] : memref<2x8x128xf32, #tpu.memory_space<vmem>>, vector<1x4x128xf32>
    %83 = vector.shape_cast %82 : vector<1x4x128xf32> to vector<4x128xf32>
    %84 = vector.shape_cast %75 : vector<4x128xf32> to vector<1x4x128xf32>
    tpu.vector_store %arg4[%c0_42, %c0_43, %c0_44], %84 {strides = array<i32>} : memref<2x8x128xf32, #tpu.memory_space<vmem>>, vector<1x4x128xf32>,
    %c1_45 = arith.constant 1 : index
    %c0_46 = arith.constant 0 : index
    %c0_47 = arith.constant 0 : index
    %85 = vector.load %arg4[%c1_45, %c0_46, %c0_47] : memref<2x8x128xf32, #tpu.memory_space<vmem>>, vector<1x4x128xf32>
    %86 = vector.shape_cast %85 : vector<1x4x128xf32> to vector<4x128xf32>
    %87 = vector.shape_cast %81 : vector<4x128xf32> to vector<1x4x128xf32>
    tpu.vector_store %arg4[%c1_45, %c0_46, %c0_47], %87 {strides = array<i32>} : memref<2x8x128xf32, #tpu.memory_space<vmem>>, vector<1x4x128xf32>,
    %cst_48 = arith.constant 0.000000e+00 : f32
    %88 = vector.broadcast %cst_48 : f32 to vector<4x128xf32>
    %cst_49 = arith.constant 0.000000e+00 : f32
    %89 = vector.broadcast %cst_49 : f32 to vector<4x128xf32>
    %c0_50 = arith.constant 0 : index
    %c4_51 = arith.constant 4 : index
    %c0_52 = arith.constant 0 : index
    %90 = vector.load %arg2[%c0_50, %c4_51, %c0_52] : memref<2x8x128xf32, #tpu.memory_space<vmem>>, vector<1x1x128xf32>
    %91 = vector.shape_cast %90 : vector<1x1x128xf32> to vector<1x128xf32>
    %c1_53 = arith.constant 1 : index
    %c4_54 = arith.constant 4 : index
    %c0_55 = arith.constant 0 : index
    %92 = vector.load %arg2[%c1_53, %c4_54, %c0_55] : memref<2x8x128xf32, #tpu.memory_space<vmem>>, vector<1x1x128xf32>
    %93 = vector.shape_cast %92 : vector<1x1x128xf32> to vector<1x128xf32>
    %c0_56 = arith.constant 0 : index
    %c0_57 = arith.constant 0 : index
    %c0_58 = arith.constant 0 : index
    %94 = vector.load %arg3[%c0_56, %c0_57, %c0_58] : memref<2x16x128xf32, #tpu.memory_space<vmem>>, vector<1x4x128xf32>
    %95 = vector.shape_cast %94 : vector<1x4x128xf32> to vector<4x128xf32>
    %c1_59 = arith.constant 1 : index
    %c0_60 = arith.constant 0 : index
    %c0_61 = arith.constant 0 : index
    %96 = vector.load %arg3[%c1_59, %c0_60, %c0_61] : memref<2x16x128xf32, #tpu.memory_space<vmem>>, vector<1x4x128xf32>
    %97 = vector.shape_cast %96 : vector<1x4x128xf32> to vector<4x128xf32>
    %98 = vector.broadcast %91 : vector<1x128xf32> to vector<4x128xf32>
    %99 = arith.mulf %98, %95 : vector<4x128xf32>
    %100 = arith.addf %88, %99 : vector<4x128xf32>
    %101 = vector.broadcast %93 : vector<1x128xf32> to vector<4x128xf32>
    %102 = arith.mulf %101, %97 : vector<4x128xf32>
    %103 = arith.subf %100, %102 : vector<4x128xf32>
    %104 = vector.broadcast %91 : vector<1x128xf32> to vector<4x128xf32>
    %105 = arith.mulf %104, %97 : vector<4x128xf32>
    %106 = arith.addf %89, %105 : vector<4x128xf32>
    %107 = vector.broadcast %93 : vector<1x128xf32> to vector<4x128xf32>
    %108 = arith.mulf %107, %95 : vector<4x128xf32>
    %109 = arith.addf %106, %108 : vector<4x128xf32>
    %c0_62 = arith.constant 0 : index
    %c5 = arith.constant 5 : index
    %c0_63 = arith.constant 0 : index
    %110 = vector.load %arg2[%c0_62, %c5, %c0_63] : memref<2x8x128xf32, #tpu.memory_space<vmem>>, vector<1x1x128xf32>
    %111 = vector.shape_cast %110 : vector<1x1x128xf32> to vector<1x128xf32>
    %c1_64 = arith.constant 1 : index
    %c5_65 = arith.constant 5 : index
    %c0_66 = arith.constant 0 : index
    %112 = vector.load %arg2[%c1_64, %c5_65, %c0_66] : memref<2x8x128xf32, #tpu.memory_space<vmem>>, vector<1x1x128xf32>
    %113 = vector.shape_cast %112 : vector<1x1x128xf32> to vector<1x128xf32>
    %c0_67 = arith.constant 0 : index
    %c4_68 = arith.constant 4 : index
    %c0_69 = arith.constant 0 : index
    %114 = vector.load %arg3[%c0_67, %c4_68, %c0_69] : memref<2x16x128xf32, #tpu.memory_space<vmem>>, vector<1x4x128xf32>
    %115 = vector.shape_cast %114 : vector<1x4x128xf32> to vector<4x128xf32>
    %c1_70 = arith.constant 1 : index
    %c4_71 = arith.constant 4 : index
    %c0_72 = arith.constant 0 : index
    %116 = vector.load %arg3[%c1_70, %c4_71, %c0_72] : memref<2x16x128xf32, #tpu.memory_space<vmem>>, vector<1x4x128xf32>
    %117 = vector.shape_cast %116 : vector<1x4x128xf32> to vector<4x128xf32>
    %118 = vector.broadcast %111 : vector<1x128xf32> to vector<4x128xf32>
    %119 = arith.mulf %118, %115 : vector<4x128xf32>
    %120 = arith.addf %103, %119 : vector<4x128xf32>
    %121 = vector.broadcast %113 : vector<1x128xf32> to vector<4x128xf32>
    %122 = arith.mulf %121, %117 : vector<4x128xf32>
    %123 = arith.subf %120, %122 : vector<4x128xf32>
    %124 = vector.broadcast %111 : vector<1x128xf32> to vector<4x128xf32>
    %125 = arith.mulf %124, %117 : vector<4x128xf32>
    %126 = arith.addf %109, %125 : vector<4x128xf32>
    %127 = vector.broadcast %113 : vector<1x128xf32> to vector<4x128xf32>
    %128 = arith.mulf %127, %115 : vector<4x128xf32>
    %129 = arith.addf %126, %128 : vector<4x128xf32>
    %c0_73 = arith.constant 0 : index
    %c6 = arith.constant 6 : index
    %c0_74 = arith.constant 0 : index
    %130 = vector.load %arg2[%c0_73, %c6, %c0_74] : memref<2x8x128xf32, #tpu.memory_space<vmem>>, vector<1x1x128xf32>
    %131 = vector.shape_cast %130 : vector<1x1x128xf32> to vector<1x128xf32>
    %c1_75 = arith.constant 1 : index
    %c6_76 = arith.constant 6 : index
    %c0_77 = arith.constant 0 : index
    %132 = vector.load %arg2[%c1_75, %c6_76, %c0_77] : memref<2x8x128xf32, #tpu.memory_space<vmem>>, vector<1x1x128xf32>
    %133 = vector.shape_cast %132 : vector<1x1x128xf32> to vector<1x128xf32>
    %c0_78 = arith.constant 0 : index
    %c8_79 = arith.constant 8 : index
    %c0_80 = arith.constant 0 : index
    %134 = vector.load %arg3[%c0_78, %c8_79, %c0_80] : memref<2x16x128xf32, #tpu.memory_space<vmem>>, vector<1x4x128xf32>
    %135 = vector.shape_cast %134 : vector<1x4x128xf32> to vector<4x128xf32>
    %c1_81 = arith.constant 1 : index
    %c8_82 = arith.constant 8 : index
    %c0_83 = arith.constant 0 : index
    %136 = vector.load %arg3[%c1_81, %c8_82, %c0_83] : memref<2x16x128xf32, #tpu.memory_space<vmem>>, vector<1x4x128xf32>
    %137 = vector.shape_cast %136 : vector<1x4x128xf32> to vector<4x128xf32>
    %138 = vector.broadcast %131 : vector<1x128xf32> to vector<4x128xf32>
    %139 = arith.mulf %138, %135 : vector<4x128xf32>
    %140 = arith.addf %123, %139 : vector<4x128xf32>
    %141 = vector.broadcast %133 : vector<1x128xf32> to vector<4x128xf32>
    %142 = arith.mulf %141, %137 : vector<4x128xf32>
    %143 = arith.subf %140, %142 : vector<4x128xf32>
    %144 = vector.broadcast %131 : vector<1x128xf32> to vector<4x128xf32>
    %145 = arith.mulf %144, %137 : vector<4x128xf32>
    %146 = arith.addf %129, %145 : vector<4x128xf32>
    %147 = vector.broadcast %133 : vector<1x128xf32> to vector<4x128xf32>
    %148 = arith.mulf %147, %135 : vector<4x128xf32>
    %149 = arith.addf %146, %148 : vector<4x128xf32>
    %c0_84 = arith.constant 0 : index
    %c7 = arith.constant 7 : index
    %c0_85 = arith.constant 0 : index
    %150 = vector.load %arg2[%c0_84, %c7, %c0_85] : memref<2x8x128xf32, #tpu.memory_space<vmem>>, vector<1x1x128xf32>
    %151 = vector.shape_cast %150 : vector<1x1x128xf32> to vector<1x128xf32>
    %c1_86 = arith.constant 1 : index
    %c7_87 = arith.constant 7 : index
    %c0_88 = arith.constant 0 : index
    %152 = vector.load %arg2[%c1_86, %c7_87, %c0_88] : memref<2x8x128xf32, #tpu.memory_space<vmem>>, vector<1x1x128xf32>
    %153 = vector.shape_cast %152 : vector<1x1x128xf32> to vector<1x128xf32>
    %c0_89 = arith.constant 0 : index
    %c12_90 = arith.constant 12 : index
    %c0_91 = arith.constant 0 : index
    %154 = vector.load %arg3[%c0_89, %c12_90, %c0_91] : memref<2x16x128xf32, #tpu.memory_space<vmem>>, vector<1x4x128xf32>
    %155 = vector.shape_cast %154 : vector<1x4x128xf32> to vector<4x128xf32>
    %c1_92 = arith.constant 1 : index
    %c12_93 = arith.constant 12 : index
    %c0_94 = arith.constant 0 : index
    %156 = vector.load %arg3[%c1_92, %c12_93, %c0_94] : memref<2x16x128xf32, #tpu.memory_space<vmem>>, vector<1x4x128xf32>
    %157 = vector.shape_cast %156 : vector<1x4x128xf32> to vector<4x128xf32>
    %158 = vector.broadcast %151 : vector<1x128xf32> to vector<4x128xf32>
    %159 = arith.mulf %158, %155 : vector<4x128xf32>
    %160 = arith.addf %143, %159 : vector<4x128xf32>
    %161 = vector.broadcast %153 : vector<1x128xf32> to vector<4x128xf32>
    %162 = arith.mulf %161, %157 : vector<4x128xf32>
    %163 = arith.subf %160, %162 : vector<4x128xf32>
    %164 = vector.broadcast %151 : vector<1x128xf32> to vector<4x128xf32>
    %165 = arith.mulf %164, %157 : vector<4x128xf32>
    %166 = arith.addf %149, %165 : vector<4x128xf32>
    %167 = vector.broadcast %153 : vector<1x128xf32> to vector<4x128xf32>
    %168 = arith.mulf %167, %155 : vector<4x128xf32>
    %169 = arith.addf %166, %168 : vector<4x128xf32>
    %c0_95 = arith.constant 0 : index
    %c4_96 = arith.constant 4 : index
    %c0_97 = arith.constant 0 : index
    %170 = vector.load %arg4[%c0_95, %c4_96, %c0_97] : memref<2x8x128xf32, #tpu.memory_space<vmem>>, vector<1x4x128xf32>
    %171 = vector.shape_cast %170 : vector<1x4x128xf32> to vector<4x128xf32>
    %172 = vector.shape_cast %163 : vector<4x128xf32> to vector<1x4x128xf32>
    tpu.vector_store %arg4[%c0_95, %c4_96, %c0_97], %172 {strides = array<i32>} : memref<2x8x128xf32, #tpu.memory_space<vmem>>, vector<1x4x128xf32>,
    %c1_98 = arith.constant 1 : index
    %c4_99 = arith.constant 4 : index
    %c0_100 = arith.constant 0 : index
    %173 = vector.load %arg4[%c1_98, %c4_99, %c0_100] : memref<2x8x128xf32, #tpu.memory_space<vmem>>, vector<1x4x128xf32>
    %174 = vector.shape_cast %173 : vector<1x4x128xf32> to vector<4x128xf32>
    %175 = vector.shape_cast %169 : vector<4x128xf32> to vector<1x4x128xf32>
    tpu.vector_store %arg4[%c1_98, %c4_99, %c0_100], %175 {strides = array<i32>} : memref<2x8x128xf32, #tpu.memory_space<vmem>>, vector<1x4x128xf32>,
    return
  }
  func.func @transform_0(%arg0: i32, %arg1: i32) -> (i32, i32, i32) {
    %c0_i32 = arith.constant 0 : i32
    %c0_i32_0 = arith.constant 0 : i32
    return %c0_i32, %arg1, %arg0 : i32, i32, i32
  }
  func.func @transform_1(%arg0: i32, %arg1: i32) -> (i32, i32, i32) {
    %c0_i32 = arith.constant 0 : i32
    %c0_i32_0 = arith.constant 0 : i32
    %c0_i32_1 = arith.constant 0 : i32
    return %c0_i32, %c0_i32_0, %arg0 : i32, i32, i32
  }
  func.func @transform_2(%arg0: i32, %arg1: i32) -> (i32, i32, i32) {
    %c0_i32 = arith.constant 0 : i32
    %c0_i32_0 = arith.constant 0 : i32
    return %c0_i32, %arg1, %arg0 : i32, i32, i32
  }
}

</mosaic_0001>

<llo_original>
// kernel: squeeze.2
$region0: #{squeeze.2}
  %s0 = inlined_call_operand.vmem [shape: f32[1,8,32], index: 0, kind: input, shape index: {}]
  %s1 = inlined_call_operand.vmem [shape: f32[2,4,8,4], index: 1, kind: output, shape index: {}]
  %v2 = vld [vmem:[%s0] sm:$0xff]
  %vm3 = vcmask 31744
  %4 = vst.msk [vmem:[%s1] ss:$8 sm:$0xf] %vm3, %v2
  %5 = vst.msk [vmem:[%s1] ss:$8 sm:$0xf0] %vm3, %v2
  %v6 = vld [vmem:[%s0] sm:$0xff]
  %7 = vrot.lane.b32.xlu0 %v6, 124
  %v8 = vpop.permute.xlu0 %7
  %vm9 = vcmask 31744
  %s10 = scalar_lea.vmem %s1, 1
  %11 = vst.msk [vmem:[%s10] ss:$8 sm:$0xf] %vm9, %v8
  %s12 = scalar_lea.vmem %s1, 1
  %13 = vst.msk [vmem:[%s12] ss:$8 sm:$0xf0] %vm9, %v8
  %v14 = vld [vmem:[%s0] sm:$0xff]
  %15 = vrot.lane.b32.xlu0 %v14, 120
  %v16 = vpop.permute.xlu0 %15
  %vm17 = vcmask 31744
  %s18 = scalar_lea.vmem %s1, 2
  %19 = vst.msk [vmem:[%s18] ss:$8 sm:$0xf] %vm17, %v16
  %s20 = scalar_lea.vmem %s1, 2
  %21 = vst.msk [vmem:[%s20] ss:$8 sm:$0xf0] %vm17, %v16
  %v22 = vld [vmem:[%s0] sm:$0xff]
  %23 = vrot.lane.b32.xlu0 %v22, 116
  %v24 = vpop.permute.xlu0 %23
  %vm25 = vcmask 31744
  %s26 = scalar_lea.vmem %s1, 3
  %27 = vst.msk [vmem:[%s26] ss:$8 sm:$0xf] %vm25, %v24
  %s28 = scalar_lea.vmem %s1, 3
  %29 = vst.msk [vmem:[%s28] ss:$8 sm:$0xf0] %vm25, %v24
  %v30 = vld [vmem:[%s0] sm:$0xff]
  %31 = vrot.lane.b32.xlu0 %v30, 112
  %v32 = vpop.permute.xlu0 %31
  %vm33 = vcmask 31744
  %s34 = scalar_lea.vmem %s1, 4
  %35 = vst.msk [vmem:[%s34] ss:$8 sm:$0xf] %vm33, %v32
  %s36 = scalar_lea.vmem %s1, 4
  %37 = vst.msk [vmem:[%s36] ss:$8 sm:$0xf0] %vm33, %v32
  %v38 = vld [vmem:[%s0] sm:$0xff]
  %39 = vrot.lane.b32.xlu0 %v38, 108
  %v40 = vpop.permute.xlu0 %39
  %vm41 = vcmask 31744
  %s42 = scalar_lea.vmem %s1, 5
  %43 = vst.msk [vmem:[%s42] ss:$8 sm:$0xf] %vm41, %v40
  %s44 = scalar_lea.vmem %s1, 5
  %45 = vst.msk [vmem:[%s44] ss:$8 sm:$0xf0] %vm41, %v40
  %v46 = vld [vmem:[%s0] sm:$0xff]
  %47 = vrot.lane.b32.xlu0 %v46, 104
  %v48 = vpop.permute.xlu0 %47
  %vm49 = vcmask 31744
  %s50 = scalar_lea.vmem %s1, 6
  %51 = vst.msk [vmem:[%s50] ss:$8 sm:$0xf] %vm49, %v48
  %s52 = scalar_lea.vmem %s1, 6
  %53 = vst.msk [vmem:[%s52] ss:$8 sm:$0xf0] %vm49, %v48
  %v54 = vld [vmem:[%s0] sm:$0xff]
  %55 = vrot.lane.b32.xlu0 %v54, 100
  %v56 = vpop.permute.xlu0 %55
  %vm57 = vcmask 31744
  %s58 = scalar_lea.vmem %s1, 7
  %59 = vst.msk [vmem:[%s58] ss:$8 sm:$0xf] %vm57, %v56
  %s60 = scalar_lea.vmem %s1, 7
  %61 = vst.msk [vmem:[%s60] ss:$8 sm:$0xf0] %vm57, %v56

// kernel: reverse.1
$region0: #{reverse.1}
  %s0 = inlined_call_operand.vmem [shape: f32[2,4,16,7], index: 0, kind: input, shape index: {}]
  %s1 = inlined_call_operand.vmem [shape: f32[2,4,16,7], index: 1, kind: output, shape index: {}]
  $region1: #{reverse.1} parent=0
    #allocation0 [shape = 'u8[65536]{0}', space=vmem, size = 0x10000, scoped, tag = 'operand span for operand 0']
    #allocation1 [shape = 'u8[32768]{0}', space=vmem, size = 0x8000, scoped, tag = 'operand span for operand 1']
    %s2 = scalar_lea.vmem [#allocation0], 8
    // Predicated region
    $region2: #{reverse.1} parent=1 // pred_check
      _
    $region3: #{reverse.1} parent=1 // pred_check_branch
      %4 = sbr.rel (0) target = $region5
    $region4: #{reverse.1} parent=1 // pred_region
      // Predicated region
      $region6: #{reverse.1} parent=4 // pred_check
        _
      $region7: #{reverse.1} parent=4 // pred_check_branch
        %6 = sbr.rel (0) target = $region9
      $region8: #{reverse.1} parent=4 // pred_region
        // Predicated region
        $region21: #{reverse.1} parent=8 // pred_check
          _
        $region22: #{reverse.1} parent=8 // pred_check_branch
          %36 = sbr.rel (0) target = $region24
        $region23: #{reverse.1} parent=8 // pred_region
          loop: start=0, step=1, limit=1
          $region25: #{reverse.1} parent=23 // loop_pre_header
            _
          $region26: #{reverse.1} parent=23 // loop_header
            %s38 = sphi 0, %s42
            %p39 = scmp.ge.s32.totalorder %s38, 1
            %s43 = sphi %s0, %s0
            %s44 = sphi %s2, %s2
          $region27: #{reverse.1} parent=23 // loop_header_branch
            %41 = sbr.rel (%p39) target = $region31
          $region28: #{reverse.1} parent=23 // loop_body
            %v45 = vld [vmem:[%s43] sm:$0xff]
            %46 = vst [vmem:[%s44] sm:$0xff] %v45
            %v47 = vld [vmem:[%s43 + $0x8] sm:$0xff]
            %48 = vst [vmem:[%s44 + $0x10] sm:$0xff] %v47
            %v49 = vld [vmem:[%s43 + $0x10] sm:$0xff]
            %50 = vst [vmem:[%s44 + $0x20] sm:$0xff] %v49
            %v51 = vld [vmem:[%s43 + $0x18] sm:$0xff]
            %52 = vst [vmem:[%s44 + $0x30] sm:$0xff] %v51
            %v53 = vld [vmem:[%s43 + $0x20] sm:$0xff]
            %54 = vst [vmem:[%s44 + $0x40] sm:$0xff] %v53
            %v55 = vld [vmem:[%s43 + $0x28] sm:$0xff]
            %56 = vst [vmem:[%s44 + $0x50] sm:$0xff] %v55
            %v57 = vld [vmem:[%s43 + $0x30] sm:$0xff]
            %58 = vst [vmem:[%s44 + $0x60] sm:$0xff] %v57
            %v59 = vld [vmem:[%s43 + $0x38] sm:$0xff]
            %60 = vst [vmem:[%s44 + $0x70] sm:$0xff] %v59
          $region29: #{reverse.1} parent=23 // loop_footer
            %s42 = sadd.s32 1, %s38
          $region30: #{reverse.1} parent=23 // loop_footer_branch
            %37 = sbr.rel target = $region26
          $region31: #{reverse.1} parent=23 // loop_exit
            _
        $region24: #{reverse.1} parent=8 // pred_fallthru
          _
        // Predicated region
        $region32: #{reverse.1} parent=8 // pred_check
          _
        $region33: #{reverse.1} parent=8 // pred_check_branch
          %62 = sbr.rel target = $region35
        $region34: #{reverse.1} parent=8 // pred_region
          _
        $region35: #{reverse.1} parent=8 // pred_fallthru
          _
      $region9: #{reverse.1} parent=4 // pred_fallthru
        _
      // Predicated region
      $region10: #{reverse.1} parent=4 // pred_check
        _
      $region11: #{reverse.1} parent=4 // pred_check_branch
        %8 = sbr.rel target = $region13
      $region12: #{reverse.1} parent=4 // pred_region
        %s10 = ssub.s32 256, 1
        loop: start=0, step=1, limit=1
        $region14: #{reverse.1} parent=12 // loop_pre_header
          _
        $region15: #{reverse.1} parent=12 // loop_header
          %s12 = sphi 0, %s16
          %p13 = scmp.ge.s32.totalorder %s12, 1
          %s17 = sphi %s0, %s0
          %s18 = sphi %s2, %s2
        $region16: #{reverse.1} parent=12 // loop_header_branch
          %15 = sbr.rel (%p13) target = $region20
        $region17: #{reverse.1} parent=12 // loop_body
          %v19 = vld [vmem:[%s17] sm:%s10]
          %20 = vst [vmem:[%s18] sm:%s10] %v19
          %v21 = vld [vmem:[%s17 + $0x8] sm:%s10]
          %22 = vst [vmem:[%s18 + $0x10] sm:%s10] %v21
          %v23 = vld [vmem:[%s17 + $0x10] sm:%s10]
          %24 = vst [vmem:[%s18 + $0x20] sm:%s10] %v23
          %v25 = vld [vmem:[%s17 + $0x18] sm:%s10]
          %26 = vst [vmem:[%s18 + $0x30] sm:%s10] %v25
          %v27 = vld [vmem:[%s17 + $0x20] sm:%s10]
          %28 = vst [vmem:[%s18 + $0x40] sm:%s10] %v27
          %v29 = vld [vmem:[%s17 + $0x28] sm:%s10]
          %30 = vst [vmem:[%s18 + $0x50] sm:%s10] %v29
          %v31 = vld [vmem:[%s17 + $0x30] sm:%s10]
          %32 = vst [vmem:[%s18 + $0x60] sm:%s10] %v31
          %v33 = vld [vmem:[%s17 + $0x38] sm:%s10]
          %34 = vst [vmem:[%s18 + $0x70] sm:%s10] %v33
        $region18: #{reverse.1} parent=12 // loop_footer
          %s16 = sadd.s32 1, %s12
        $region19: #{reverse.1} parent=12 // loop_footer_branch
          %11 = sbr.rel target = $region15
        $region20: #{reverse.1} parent=12 // loop_exit
          _
      $region13: #{reverse.1} parent=4 // pred_fallthru
        _
    $region5: #{reverse.1} parent=1 // pred_fallthru
      _
    %63 = vnop
    %s64 = scalar_lea.vmem [#allocation0], 7
    %v65 = vld [vmem:[%s64] ss:$-1 sm:$0xff]
    %v66 = vrot.slane %v65, 1
    %67 = vst [vmem:[#allocation1] sm:$0xff] %v66
    %s68 = scalar_lea.vmem [#allocation0], 8
    %s69 = scalar_lea.vmem %s68, 7 [#allocation0]
    %v70 = vld [vmem:[%s69] ss:$-1 sm:$0xff]
    %v71 = vrot.slane %v70, 1
    %v72 = vlaneseq
    %v73 = vshrl.u32 %v72, 7
    %vm74 = vcmp.lt.s32.totalorder %v73, 7
    %75 = vst.msk [vmem:[#allocation1] sm:$0xff] %vm74, %v71
    %s76 = scalar_lea.vmem [#allocation1], 8
    %s77 = scalar_lea.vmem [#allocation0], 16
    %s78 = scalar_lea.vmem %s77, 7 [#allocation0]
    %v79 = vld [vmem:[%s78] ss:$-1 sm:$0xff]
    %v80 = vrot.slane %v79, 1
    %81 = vst [vmem:[%s76] sm:$0xff] %v80
    %s82 = scalar_lea.vmem %s77, 8 [#allocation0]
    %s83 = scalar_lea.vmem %s82, 7 [#allocation0]
    %v84 = vld [vmem:[%s83] ss:$-1 sm:$0xff]
    %v85 = vrot.slane %v84, 1
    %v86 = vlaneseq
    %v87 = vshrl.u32 %v86, 7
    %vm88 = vcmp.lt.s32.totalorder %v87, 7
    %89 = vst.msk [vmem:[%s76] sm:$0xff] %vm88, %v85
    %s90 = scalar_lea.vmem [#allocation1], 16
    %s91 = scalar_lea.vmem [#allocation0], 32
    %s92 = scalar_lea.vmem %s91, 7 [#allocation0]
    %v93 = vld [vmem:[%s92] ss:$-1 sm:$0xff]
    %v94 = vrot.slane %v93, 1
    %95 = vst [vmem:[%s90] sm:$0xff] %v94
    %s96 = scalar_lea.vmem %s91, 8 [#allocation0]
    %s97 = scalar_lea.vmem %s96, 7 [#allocation0]
    %v98 = vld [vmem:[%s97] ss:$-1 sm:$0xff]
    %v99 = vrot.slane %v98, 1
    %v100 = vlaneseq
    %v101 = vshrl.u32 %v100, 7
    %vm102 = vcmp.lt.s32.totalorder %v101, 7
    %103 = vst.msk [vmem:[%s90] sm:$0xff] %vm102, %v99
    %s104 = scalar_lea.vmem [#allocation1], 24
    %s105 = scalar_lea.vmem [#allocation0], 48
    %s106 = scalar_lea.vmem %s105, 7 [#allocation0]
    %v107 = vld [vmem:[%s106] ss:$-1 sm:$0xff]
    %v108 = vrot.slane %v107, 1
    %109 = vst [vmem:[%s104] sm:$0xff] %v108
    %s110 = scalar_lea.vmem %s105, 8 [#allocation0]
    %s111 = scalar_lea.vmem %s110, 7 [#allocation0]
    %v112 = vld [vmem:[%s111] ss:$-1 sm:$0xff]
    %v113 = vrot.slane %v112, 1
    %v114 = vlaneseq
    %v115 = vshrl.u32 %v114, 7
    %vm116 = vcmp.lt.s32.totalorder %v115, 7
    %117 = vst.msk [vmem:[%s104] sm:$0xff] %vm116, %v113
    %s118 = scalar_lea.vmem [#allocation1], 32
    %s119 = scalar_lea.vmem [#allocation0], 64
    %s120 = scalar_lea.vmem %s119, 7 [#allocation0]
    %v121 = vld [vmem:[%s120] ss:$-1 sm:$0xff]
    %v122 = vrot.slane %v121, 1
    %123 = vst [vmem:[%s118] sm:$0xff] %v122
    %s124 = scalar_lea.vmem %s119, 8 [#allocation0]
    %s125 = scalar_lea.vmem %s124, 7 [#allocation0]
    %v126 = vld [vmem:[%s125] ss:$-1 sm:$0xff]
    %v127 = vrot.slane %v126, 1
    %v128 = vlaneseq
    %v129 = vshrl.u32 %v128, 7
    %vm130 = vcmp.lt.s32.totalorder %v129, 7
    %131 = vst.msk [vmem:[%s118] sm:$0xff] %vm130, %v127
    %s132 = scalar_lea.vmem [#allocation1], 40
    %s133 = scalar_lea.vmem [#allocation0], 80
    %s134 = scalar_lea.vmem %s133, 7 [#allocation0]
    %v135 = vld [vmem:[%s134] ss:$-1 sm:$0xff]
    %v136 = vrot.slane %v135, 1
    %137 = vst [vmem:[%s132] sm:$0xff] %v136
    %s138 = scalar_lea.vmem %s133, 8 [#allocation0]
    %s139 = scalar_lea.vmem %s138, 7 [#allocation0]
    %v140 = vld [vmem:[%s139] ss:$-1 sm:$0xff]
    %v141 = vrot.slane %v140, 1
    %v142 = vlaneseq
    %v143 = vshrl.u32 %v142, 7
    %vm144 = vcmp.lt.s32.totalorder %v143, 7
    %145 = vst.msk [vmem:[%s132] sm:$0xff] %vm144, %v141
    %s146 = scalar_lea.vmem [#allocation1], 48
    %s147 = scalar_lea.vmem [#allocation0], 96
    %s148 = scalar_lea.vmem %s147, 7 [#allocation0]
    %v149 = vld [vmem:[%s148] ss:$-1 sm:$0xff]
    %v150 = vrot.slane %v149, 1
    %151 = vst [vmem:[%s146] sm:$0xff] %v150
    %s152 = scalar_lea.vmem %s147, 8 [#allocation0]
    %s153 = scalar_lea.vmem %s152, 7 [#allocation0]
    %v154 = vld [vmem:[%s153] ss:$-1 sm:$0xff]
    %v155 = vrot.slane %v154, 1
    %v156 = vlaneseq
    %v157 = vshrl.u32 %v156, 7
    %vm158 = vcmp.lt.s32.totalorder %v157, 7
    %159 = vst.msk [vmem:[%s146] sm:$0xff] %vm158, %v155
    %s160 = scalar_lea.vmem [#allocation1], 56
    %s161 = scalar_lea.vmem [#allocation0], 112
    %s162 = scalar_lea.vmem %s161, 7 [#allocation0]
    %v163 = vld [vmem:[%s162] ss:$-1 sm:$0xff]
    %v164 = vrot.slane %v163, 1
    %165 = vst [vmem:[%s160] sm:$0xff] %v164
    %s166 = scalar_lea.vmem %s161, 8 [#allocation0]
    %s167 = scalar_lea.vmem %s166, 7 [#allocation0]
    %v168 = vld [vmem:[%s167] ss:$-1 sm:$0xff]
    %v169 = vrot.slane %v168, 1
    %v170 = vlaneseq
    %v171 = vshrl.u32 %v170, 7
    %vm172 = vcmp.lt.s32.totalorder %v171, 7
    %173 = vst.msk [vmem:[%s160] sm:$0xff] %vm172, %v169
    // Predicated region
    $region36: #{reverse.1} parent=1 // pred_check
      _
    $region37: #{reverse.1} parent=1 // pred_check_branch
      %175 = sbr.rel (0) target = $region39
    $region38: #{reverse.1} parent=1 // pred_region
      // Predicated region
      $region40: #{reverse.1} parent=38 // pred_check
        _
      $region41: #{reverse.1} parent=38 // pred_check_branch
        %177 = sbr.rel (0) target = $region43
      $region42: #{reverse.1} parent=38 // pred_region
        // Predicated region
        $region55: #{reverse.1} parent=42 // pred_check
          _
        $region56: #{reverse.1} parent=42 // pred_check_branch
          %207 = sbr.rel (0) target = $region58
        $region57: #{reverse.1} parent=42 // pred_region
          loop: start=0, step=1, limit=1
          $region59: #{reverse.1} parent=57 // loop_pre_header
            _
          $region60: #{reverse.1} parent=57 // loop_header
            %s209 = sphi 0, %s213
            %p210 = scmp.ge.s32.totalorder %s209, 1
            %s214 = sphi [#allocation1], [#allocation1]
            %s215 = sphi %s1, %s1
          $region61: #{reverse.1} parent=57 // loop_header_branch
            %212 = sbr.rel (%p210) target = $region65
          $region62: #{reverse.1} parent=57 // loop_body
            %v216 = vld [vmem:[%s214] sm:$0xff]
            %217 = vst [vmem:[%s215] sm:$0xff] %v216
            %v218 = vld [vmem:[%s214 + $0x8] sm:$0xff]
            %219 = vst [vmem:[%s215 + $0x8] sm:$0xff] %v218
            %v220 = vld [vmem:[%s214 + $0x10] sm:$0xff]
            %221 = vst [vmem:[%s215 + $0x10] sm:$0xff] %v220
            %v222 = vld [vmem:[%s214 + $0x18] sm:$0xff]
            %223 = vst [vmem:[%s215 + $0x18] sm:$0xff] %v222
            %v224 = vld [vmem:[%s214 + $0x20] sm:$0xff]
            %225 = vst [vmem:[%s215 + $0x20] sm:$0xff] %v224
            %v226 = vld [vmem:[%s214 + $0x28] sm:$0xff]
            %227 = vst [vmem:[%s215 + $0x28] sm:$0xff] %v226
            %v228 = vld [vmem:[%s214 + $0x30] sm:$0xff]
            %229 = vst [vmem:[%s215 + $0x30] sm:$0xff] %v228
            %v230 = vld [vmem:[%s214 + $0x38] sm:$0xff]
            %231 = vst [vmem:[%s215 + $0x38] sm:$0xff] %v230
          $region63: #{reverse.1} parent=57 // loop_footer
            %s213 = sadd.s32 1, %s209
          $region64: #{reverse.1} parent=57 // loop_footer_branch
            %208 = sbr.rel target = $region60
          $region65: #{reverse.1} parent=57 // loop_exit
            _
        $region58: #{reverse.1} parent=42 // pred_fallthru
          _
        // Predicated region
        $region66: #{reverse.1} parent=42 // pred_check
          _
        $region67: #{reverse.1} parent=42 // pred_check_branch
          %233 = sbr.rel target = $region69
        $region68: #{reverse.1} parent=42 // pred_region
          _
        $region69: #{reverse.1} parent=42 // pred_fallthru
          _
      $region43: #{reverse.1} parent=38 // pred_fallthru
        _
      // Predicated region
      $region44: #{reverse.1} parent=38 // pred_check
        _
      $region45: #{reverse.1} parent=38 // pred_check_branch
        %179 = sbr.rel target = $region47
      $region46: #{reverse.1} parent=38 // pred_region
        %s181 = ssub.s32 256, 1
        loop: start=0, step=1, limit=1
        $region48: #{reverse.1} parent=46 // loop_pre_header
          _
        $region49: #{reverse.1} parent=46 // loop_header
          %s183 = sphi 0, %s187
          %p184 = scmp.ge.s32.totalorder %s183, 1
          %s188 = sphi [#allocation1], [#allocation1]
          %s189 = sphi %s1, %s1
        $region50: #{reverse.1} parent=46 // loop_header_branch
          %186 = sbr.rel (%p184) target = $region54
        $region51: #{reverse.1} parent=46 // loop_body
          %v190 = vld [vmem:[%s188] sm:%s181]
          %191 = vst [vmem:[%s189] sm:%s181] %v190
          %v192 = vld [vmem:[%s188 + $0x8] sm:%s181]
          %193 = vst [vmem:[%s189 + $0x8] sm:%s181] %v192
          %v194 = vld [vmem:[%s188 + $0x10] sm:%s181]
          %195 = vst [vmem:[%s189 + $0x10] sm:%s181] %v194
          %v196 = vld [vmem:[%s188 + $0x18] sm:%s181]
          %197 = vst [vmem:[%s189 + $0x18] sm:%s181] %v196
          %v198 = vld [vmem:[%s188 + $0x20] sm:%s181]
          %199 = vst [vmem:[%s189 + $0x20] sm:%s181] %v198
          %v200 = vld [vmem:[%s188 + $0x28] sm:%s181]
          %201 = vst [vmem:[%s189 + $0x28] sm:%s181] %v200
          %v202 = vld [vmem:[%s188 + $0x30] sm:%s181]
          %203 = vst [vmem:[%s189 + $0x30] sm:%s181] %v202
          %v204 = vld [vmem:[%s188 + $0x38] sm:%s181]
          %205 = vst [vmem:[%s189 + $0x38] sm:%s181] %v204
        $region52: #{reverse.1} parent=46 // loop_footer
          %s187 = sadd.s32 1, %s183
        $region53: #{reverse.1} parent=46 // loop_footer_branch
          %182 = sbr.rel target = $region49
        $region54: #{reverse.1} parent=46 // loop_exit
          _
      $region47: #{reverse.1} parent=38 // pred_fallthru
        _
    $region39: #{reverse.1} parent=1 // pred_fallthru
      _
    %234 = vnop

// kernel: spectral_conv2d_forward.1
$region0: #{spectral_conv2d_forward.1}
  #allocation0 [shape = 'u32[]', space=smem, size = 0x4, offset = 0x4, fixed_abs, tag = 'smem constant byte address 0x4 - core index']
  #allocation1 [shape = 'u32[72,128]{1,0:T(1,128)}', space=vmem, size = 0x9000, scoped, tag = 'internal scratch']
  %s0 = inlined_call_operand.vmem [shape: f32[2,8,128], index: 0, kind: input, shape index: {}]
  %s1 = inlined_call_operand.vmem [shape: f32[2,16,128], index: 1, kind: input, shape index: {}]
  %s2 = inlined_call_operand.vmem [shape: f32[2,8,128], index: 2, kind: output, shape index: {}]
  %s3 = sld [smem:[#allocation0]]
  $region18: #{spectral_conv2d_forward.1} parent=0
    _
  %s5 = ssub.s32 1, %s3
  %s6 = scalar_select 0, %s5, %s3
  // Predicated region
  $region2: #{spectral_conv2d_forward.1} parent=0 // pred_check
    _
  $region3: #{spectral_conv2d_forward.1} parent=0 // pred_check_branch
    %8 = sbr.rel (0) target = $region5
  $region4: #{spectral_conv2d_forward.1} parent=0 // pred_region
    _
  $region5: #{spectral_conv2d_forward.1} parent=0 // pred_fallthru
    _
  // Predicated region
  $region6: #{spectral_conv2d_forward.1} parent=0 // pred_check
    _
  $region7: #{spectral_conv2d_forward.1} parent=0 // pred_check_branch
    %10 = sbr.rel (0) target = $region9
  $region8: #{spectral_conv2d_forward.1} parent=0 // pred_region
    _
  $region9: #{spectral_conv2d_forward.1} parent=0 // pred_fallthru
    _
  %v11 = vld [vmem:[%s0] sm:$0x1]
  %s12 = scalar_lea.vmem %s0, 8
  %v13 = vld [vmem:[%s12] sm:$0x1]
  %v14 = vld [vmem:[%s1] sm:$0xf]
  %s15 = scalar_lea.vmem %s1, 16
  %v16 = vld [vmem:[%s15] sm:$0xf]
  %v17 = vperm.slane %v11, 0
  %v18 = vmul.f32 %v17, %v14
  %v19 = vadd.f32 %v18, 0.0
  %v20 = vperm.slane %v13, 0
  %v21 = vmul.f32 %v20, %v16
  %v22 = vsub.f32 %v19, %v21
  %v23 = vmul.f32 %v17, %v16
  %v24 = vadd.f32 %v23, 0.0
  %v25 = vmul.f32 %v20, %v14
  %v26 = vadd.f32 %v24, %v25
  %v27 = vld [vmem:[%s0 + $0x1] sm:$0x1]
  %v28 = vld [vmem:[%s12 + $0x1] sm:$0x1]
  %v29 = vld [vmem:[%s1 + $0x4] sm:$0xf]
  %v30 = vld [vmem:[%s15 + $0x4] sm:$0xf]
  %v31 = vperm.slane %v27, 0
  %v32 = vmul.f32 %v31, %v29
  %v33 = vadd.f32 %v22, %v32
  %v34 = vperm.slane %v28, 0
  %v35 = vmul.f32 %v34, %v30
  %v36 = vsub.f32 %v33, %v35
  %v37 = vmul.f32 %v31, %v30
  %v38 = vadd.f32 %v26, %v37
  %v39 = vmul.f32 %v34, %v29
  %v40 = vadd.f32 %v38, %v39
  %v41 = vld [vmem:[%s0 + $0x2] sm:$0x1]
  %v42 = vld [vmem:[%s12 + $0x2] sm:$0x1]
  %v43 = vld [vmem:[%s1 + $0x8] sm:$0xf]
  %v44 = vld [vmem:[%s15 + $0x8] sm:$0xf]
  %v45 = vperm.slane %v41, 0
  %v46 = vmul.f32 %v45, %v43
  %v47 = vadd.f32 %v36, %v46
  %v48 = vperm.slane %v42, 0
  %v49 = vmul.f32 %v48, %v44
  %v50 = vsub.f32 %v47, %v49
  %v51 = vmul.f32 %v45, %v44
  %v52 = vadd.f32 %v40, %v51
  %v53 = vmul.f32 %v48, %v43
  %v54 = vadd.f32 %v52, %v53
  %v55 = vld [vmem:[%s0 + $0x3] sm:$0x1]
  %v56 = vld [vmem:[%s12 + $0x3] sm:$0x1]
  %v57 = vld [vmem:[%s1 + $0xc] sm:$0xf]
  %v58 = vld [vmem:[%s15 + $0xc] sm:$0xf]
  %v59 = vperm.slane %v55, 0
  %v60 = vmul.f32 %v59, %v57
  %v61 = vadd.f32 %v50, %v60
  %v62 = vperm.slane %v56, 0
  %v63 = vmul.f32 %v62, %v58
  %v64 = vsub.f32 %v61, %v63
  %v65 = vmul.f32 %v59, %v58
  %v66 = vadd.f32 %v54, %v65
  %v67 = vmul.f32 %v62, %v57
  %v68 = vadd.f32 %v66, %v67
  %69 = vst [vmem:[%s2] sm:$0xf] %v64
  %s70 = scalar_lea.vmem %s2, 8
  %71 = vst [vmem:[%s70] sm:$0xf] %v68
  %v72 = vld [vmem:[%s0 + $0x4] sm:$0x1]
  %v73 = vld [vmem:[%s12 + $0x4] sm:$0x1]
  %v74 = vld [vmem:[%s1] sm:$0xf]
  %v75 = vld [vmem:[%s15] sm:$0xf]
  %v76 = vperm.slane %v72, 0
  %v77 = vmul.f32 %v76, %v74
  %v78 = vadd.f32 %v77, 0.0
  %v79 = vperm.slane %v73, 0
  %v80 = vmul.f32 %v79, %v75
  %v81 = vsub.f32 %v78, %v80
  %v82 = vmul.f32 %v76, %v75
  %v83 = vadd.f32 %v82, 0.0
  %v84 = vmul.f32 %v79, %v74
  %v85 = vadd.f32 %v83, %v84
  %v86 = vld [vmem:[%s0 + $0x5] sm:$0x1]
  %v87 = vld [vmem:[%s12 + $0x5] sm:$0x1]
  %v88 = vld [vmem:[%s1 + $0x4] sm:$0xf]
  %v89 = vld [vmem:[%s15 + $0x4] sm:$0xf]
  %v90 = vperm.slane %v86, 0
  %v91 = vmul.f32 %v90, %v88
  %v92 = vadd.f32 %v81, %v91
  %v93 = vperm.slane %v87, 0
  %v94 = vmul.f32 %v93, %v89
  %v95 = vsub.f32 %v92, %v94
  %v96 = vmul.f32 %v90, %v89
  %v97 = vadd.f32 %v85, %v96
  %v98 = vmul.f32 %v93, %v88
  %v99 = vadd.f32 %v97, %v98
  %v100 = vld [vmem:[%s0 + $0x6] sm:$0x1]
  %v101 = vld [vmem:[%s12 + $0x6] sm:$0x1]
  %v102 = vld [vmem:[%s1 + $0x8] sm:$0xf]
  %v103 = vld [vmem:[%s15 + $0x8] sm:$0xf]
  %v104 = vperm.slane %v100, 0
  %v105 = vmul.f32 %v104, %v102
  %v106 = vadd.f32 %v95, %v105
  %v107 = vperm.slane %v101, 0
  %v108 = vmul.f32 %v107, %v103
  %v109 = vsub.f32 %v106, %v108
  %v110 = vmul.f32 %v104, %v103
  %v111 = vadd.f32 %v99, %v110
  %v112 = vmul.f32 %v107, %v102
  %v113 = vadd.f32 %v111, %v112
  %v114 = vld [vmem:[%s0 + $0x7] sm:$0x1]
  %v115 = vld [vmem:[%s12 + $0x7] sm:$0x1]
  %v116 = vld [vmem:[%s1 + $0xc] sm:$0xf]
  %v117 = vld [vmem:[%s15 + $0xc] sm:$0xf]
  %v118 = vperm.slane %v114, 0
  %v119 = vmul.f32 %v118, %v116
  %v120 = vadd.f32 %v109, %v119
  %v121 = vperm.slane %v115, 0
  %v122 = vmul.f32 %v121, %v117
  %v123 = vsub.f32 %v120, %v122
  %v124 = vmul.f32 %v118, %v117
  %v125 = vadd.f32 %v113, %v124
  %v126 = vmul.f32 %v121, %v116
  %v127 = vadd.f32 %v125, %v126
  %128 = vst [vmem:[%s2 + $0x4] sm:$0xf] %v123
  %129 = vst [vmem:[%s70 + $0x4] sm:$0xf] %v127
  // Predicated region
  $region10: #{spectral_conv2d_forward.1} parent=0 // pred_check
    _
  $region11: #{spectral_conv2d_forward.1} parent=0 // pred_check_branch
    %131 = sbr.rel (0) target = $region13
  $region12: #{spectral_conv2d_forward.1} parent=0 // pred_region
    _
  $region13: #{spectral_conv2d_forward.1} parent=0 // pred_fallthru
    _
  // Predicated region
  $region14: #{spectral_conv2d_forward.1} parent=0 // pred_check
    _
  $region15: #{spectral_conv2d_forward.1} parent=0 // pred_check_branch
    %133 = sbr.rel (0) target = $region17
  $region16: #{spectral_conv2d_forward.1} parent=0 // pred_region
    _
  $region17: #{spectral_conv2d_forward.1} parent=0 // pred_fallthru
    _

</llo_original>
